<compile_context>
chip_gen: v6e
topology: v6e:2x2x1
jax: 0.10.0
libtpu: 0.0.40
codegen_flags: <defaults>
</compile_context>

<pallas_src>
import functools

import numpy as np
import jax
import jax.numpy as jnp
from jax.experimental import pallas as pl
from jax.experimental.pallas import tpu as pltpu


# -----------------------------------------------------------------------------
# Fused Pallas kernel: all decoder layers, all three losses, one launch.
# -----------------------------------------------------------------------------
def _fused_loss_kernel(*refs, num_layers, num_classes, eos_coef):
    """SetCriterion losses for `num_layers` decoder layers in one pass.

    refs layout (inputs then output):
      refs[0 .. L-1] : per-layer pred_logits, NATIVE (B, Q, C+1) layout, model dtype
      refs[L]        : target_classes (L, B, Q, 1) int32 (num_classes == no-object)
      refs[L+1]      : packed matched lines (L, 8, M) f32; sublanes 0-3 = matched
                       predicted lines, 4-7 = matched target lines (coords on
                       sublanes, match slots on lanes); padded slots are 0 in both
                       halves so no validity mask is needed
      refs[L+2]      : SMEM f32 (L, 3) output: [loss_ce, cardinality_error, loss_line]
    """
    logits_refs = refs[:num_layers]
    tgt_ref = refs[num_layers]
    lines_ref = refs[num_layers + 1]
    out_ref = refs[num_layers + 2]

    for l in range(num_layers):
        logits = logits_refs[l][...].astype(jnp.float32)      # (B, Q, C1) cast in-kernel
        B, Q, C1 = logits.shape
        tgt = tgt_ref[l]                                       # (B, Q, 1) int32
        is_noobj = tgt == num_classes                          # (B, Q, 1) bool

        # --- weighted cross-entropy (class axis = lane axis; all math stays (B,Q,*)) --
        m = jnp.max(logits, axis=-1, keepdims=True)
        lse = m + jnp.log(jnp.sum(jnp.exp(logits - m), axis=-1, keepdims=True))
        log_probs = logits - lse                               # (B, Q, C1)
        if C1 == 2:
            # LETR special case: classes are {0, no-object}; one 2-way select.
            picked = jnp.where(is_noobj, log_probs[:, :, 1:2], log_probs[:, :, 0:1])
        else:
            cls_iota = jax.lax.broadcasted_iota(jnp.int32, (B, Q, C1), 2)
            picked = jnp.sum(jnp.where(tgt == cls_iota, log_probs, 0.0),
                             axis=-1, keepdims=True)
        nll = -picked                                          # (B, Q, 1)
        # empty_weight = [1, ..., 1, eos_coef] -> one compare, no one-hot.
        w = jnp.where(is_noobj, eos_coef, 1.0)                 # (B, Q, 1) f32
        loss_ce = jnp.sum(nll * w) / jnp.sum(w)

        # --- cardinality error (logging metric) ---------------------------------------
        last = logits[:, :, C1 - 1:C1]                         # no-object logit
        if C1 == 2:
            max_rest = logits[:, :, 0:1]
        else:
            max_rest = jnp.max(logits[:, :, :C1 - 1], axis=-1, keepdims=True)
        # torch.argmax returns the first maximal index -> ">=" matches tie behaviour.
        non_empty = (max_rest >= last).astype(jnp.float32)     # (B, Q, 1)
        is_obj = 1.0 - is_noobj.astype(jnp.float32)            # (B, Q, 1)
        card_pred = jnp.sum(non_empty, axis=1, keepdims=True)  # (B, 1, 1)
        tgt_len = jnp.sum(is_obj, axis=1, keepdims=True)       # per-image GT count
        card_err = jnp.sum(jnp.abs(card_pred - tgt_len)) / B

        # --- matched-lines L1 ----------------------------------------------------------
        lines = lines_ref[l].astype(jnp.float32)               # (8, M)
        # Sublane roll by 4 aligns each tgt row under its src row (and vice versa);
        # each |src - tgt| term appears twice, hence the 0.5.  Padded slots are 0-0.
        rolled = pltpu.roll(lines, shift=4, axis=0)
        l1_sum = 0.5 * jnp.sum(jnp.abs(lines - rolled))

        # num_items = total GT lines across the batch, clamped at 1 (same every layer).
        # TODO(synk): multi-host data-parallel training all-reduces num_items (psum).
        num_items = jnp.maximum(jnp.sum(is_obj), 1.0)

        out_ref[l, 0] = loss_ce
        out_ref[l, 1] = card_err
        out_ref[l, 2] = l1_sum / num_items


@functools.partial(jax.jit, static_argnames=("num_classes", "eos_coef"))
def _fused_losses(logits_layers, target_classes, packed_lines, *, num_classes, eos_coef):
    """One fused pallas_call covering the final layer and every aux layer."""
    L = len(logits_layers)
    kernel = functools.partial(_fused_loss_kernel, num_layers=L,
                               num_classes=num_classes, eos_coef=float(eos_coef))
    out = pl.pallas_call(
        kernel,
        out_shape=jax.ShapeDtypeStruct((L, 3), jnp.float32),
        in_specs=[pl.BlockSpec(memory_space=pltpu.MemorySpace.VMEM)] * (L + 2),
        out_specs=pl.BlockSpec(memory_space=pltpu.MemorySpace.SMEM),
    )(*logits_layers, target_classes, packed_lines)
    # NOTE: total residency is a few MB even at real LETR scale (fine for v7x's
    # 64 MiB VMEM) so the call stays gridless; with many aux layers a grid over L
    # with dimension_semantics=("parallel",) would shard layers across v7x's 2 TCs.
    losses = {}
    for l in range(L):
        sfx = "" if l == 0 else f"_{l - 1}"
        losses["loss_ce" + sfx] = out[l, 0]
        losses["cardinality_error" + sfx] = out[l, 1]
        losses["loss_line" + sfx] = out[l, 2]
    return losses


# -----------------------------------------------------------------------------
# Host-side matcher glue
# -----------------------------------------------------------------------------
def _softmax_np(x):
    x = x - x.max(axis=-1, keepdims=True)
    e = np.exp(x)
    return e / e.sum(axis=-1, keepdims=True)


def greedy_matcher(probs_np, lines_np, labels_np, tlines_np,
                   cost_class=1.0, cost_line=5.0):
    # TODO(synk): Hungarian assignment (scipy.optimize.linear_sum_assignment) replaced
    # by a deterministic greedy assignment over the same LETR cost matrix.
    indices = []
    for b in range(len(labels_np)):
        labels = labels_np[b]
        tlines = tlines_np[b]
        c_class = -probs_np[b][:, labels]                                   # (Q, T)
        c_line = np.abs(lines_np[b][:, None, :] - tlines[None, :, :]).sum(-1)
        C = cost_class * c_class + cost_line * c_line                       # (Q, T)
        used = np.zeros(C.shape[0], dtype=bool)
        src, tgt_idx = [], []
        for j in range(labels.shape[0]):
            col = np.where(used, np.inf, C[:, j])
            q = int(np.argmin(col))
            used[q] = True
            src.append(q)
            tgt_idx.append(j)
        indices.append((np.asarray(src, dtype=np.int32),
                        np.asarray(tgt_idx, dtype=np.int32)))
    return indices


# -----------------------------------------------------------------------------
# SetCriterion forward (losses = ['lines_labels', 'cardinality', 'lines'])
# -----------------------------------------------------------------------------
def set_criterion_forward(outputs, targets, num_classes=1, eos_coef=0.1,
                          max_matches=None):
    pred_logits = outputs["pred_logits"]   # (B, Q, C+1)
    B, Q, C1 = pred_logits.shape
    aux = outputs.get("aux_outputs", ())
    layer_logits = [pred_logits] + [a["pred_logits"] for a in aux]
    layer_lines = [outputs["pred_lines"]] + [a["pred_lines"] for a in aux]
    L = len(layer_logits)

    # ---- ONE device->host sync for everything the matcher / host packing needs ------
    logits_np, lines_np, labels_np, tlines_np = jax.device_get(
        (layer_logits, layer_lines,
         [t["labels"] for t in targets], [t["lines"] for t in targets]))
    labels_np = [np.asarray(x) for x in labels_np]
    tlines_np = [np.asarray(x) for x in tlines_np]

    total_gt = sum(int(x.shape[0]) for x in labels_np)
    if max_matches is None:                     # static, lane-dense match-slot count
        max_matches = max(128, ((total_gt + 127) // 128) * 128)
    M = int(max_matches)

    # ---- host-side matcher (softmax on host: no device softmax launch) + packing ----
    target_classes = np.full((L, B, Q, 1), num_classes, dtype=np.int32)
    packed_lines = np.zeros((L, 8, M), dtype=np.float32)
    for l in range(L):
        indices = greedy_matcher(_softmax_np(logits_np[l]), lines_np[l],
                                 labels_np, tlines_np)
        k = 0
        for b, (src, tj) in enumerate(indices):
            n = int(src.shape[0])
            if n == 0:
                continue
            target_classes[l, b, src, 0] = labels_np[b][tj]
            packed_lines[l, 0:4, k:k + n] = lines_np[l][b][src].T   # matched predictions
            packed_lines[l, 4:8, k:k + n] = tlines_np[b][tj].T      # matched targets
            k += n

    # ---- ONE packed H2D upload, then the single fused kernel launch ------------------
    tc_dev, lines_dev = jax.device_put((target_classes, packed_lines))
    return _fused_losses(tuple(layer_logits), tc_dev, lines_dev,
                         num_classes=num_classes, eos_coef=eos_coef)


# -----------------------------------------------------------------------------
# Main
# -----------------------------------------------------------------------------
if __name__ == "__main__":
    key = jax.random.PRNGKey(0)
    k1, k2, k3, k4, k5, k6 = jax.random.split(key, 6)

    B, Q, NUM_CLASSES = 2, 8, 1          # LETR: 1 line class + no-object
    C1 = NUM_CLASSES + 1

    outputs = {
        "pred_logits": jax.random.normal(k1, (B, Q, C1), dtype=jnp.float32),
        "pred_lines": jax.random.uniform(k2, (B, Q, 4), dtype=jnp.float32),
        # one aux decoder layer -> its losses are fused into the same pallas_call
        "aux_outputs": [{
            "pred_logits": jax.random.normal(k5, (B, Q, C1), dtype=jnp.float32),
            "pred_lines": jax.random.uniform(k6, (B, Q, 4), dtype=jnp.float32),
        }],
    }

    targets = [
        {"labels": jnp.zeros((3,), dtype=jnp.int32),
         "lines": jax.random.uniform(k3, (3, 4), dtype=jnp.float32)},
        {"labels": jnp.zeros((2,), dtype=jnp.int32),
         "lines": jax.random.uniform(k4, (2, 4), dtype=jnp.float32)},
    ]

    losses = set_criterion_forward(outputs, targets, num_classes=NUM_CLASSES,
                                   eos_coef=0.1)
    for v in losses.values():
        jax.block_until_ready(v)

    print("KERNEL_OK")
</pallas_src>

<mosaic_0001>
module attributes {stable_mosaic.version = 11 : i64} {
  func.func @_fused_loss_kernel(%arg0: memref<2x8x2xf32, #tpu.memory_space<vmem>>, %arg1: memref<2x8x2xf32, #tpu.memory_space<vmem>>, %arg2: memref<2x2x8x1xi32, #tpu.memory_space<vmem>>, %arg3: memref<2x8x128xf32, #tpu.memory_space<vmem>>, %arg4: memref<2x3xf32, #tpu.memory_space<smem>>) attributes {dimension_semantics = [], scalar_prefetch = 0 : i64, scratch_operands = 0 : i64, tpu.core_type = #tpu.core_type<tc>} {
    %c0 = arith.constant 0 : index
    %c0_0 = arith.constant 0 : index
    %c0_1 = arith.constant 0 : index
    %0 = vector.load %arg0[%c0, %c0_0, %c0_1] : memref<2x8x2xf32, #tpu.memory_space<vmem>>, vector<2x8x2xf32>
    %c0_2 = arith.constant 0 : index
    %c0_3 = arith.constant 0 : index
    %c0_4 = arith.constant 0 : index
    %c0_5 = arith.constant 0 : index
    %1 = vector.load %arg2[%c0_2, %c0_3, %c0_4, %c0_5] : memref<2x2x8x1xi32, #tpu.memory_space<vmem>>, vector<1x2x8x1xi32>
    %2 = vector.shape_cast %1 : vector<1x2x8x1xi32> to vector<2x8x1xi32>
    %c1_i32 = arith.constant 1 : i32
    %3 = vector.broadcast %c1_i32 : i32 to vector<2x8x1xi32>
    %4 = arith.cmpi eq, %2, %3 : vector<2x8x1xi32>
    %cst = arith.constant dense<0xFF800000> : vector<2x8xf32>
    %5 = vector.multi_reduction <maximumf>, %0, %cst [2] : vector<2x8x2xf32> to vector<2x8xf32>
    %6 = vector.shape_cast %5 : vector<2x8xf32> to vector<2x8x1xf32>
    %7 = vector.broadcast %6 : vector<2x8x1xf32> to vector<2x8x2xf32>
    %8 = arith.subf %0, %7 : vector<2x8x2xf32>
    %9 = math.exp %8 : vector<2x8x2xf32>
    %cst_6 = arith.constant dense<0.000000e+00> : vector<2x8xf32>
    %10 = vector.multi_reduction <add>, %9, %cst_6 [2] : vector<2x8x2xf32> to vector<2x8xf32>
    %11 = vector.shape_cast %10 : vector<2x8xf32> to vector<2x8x1xf32>
    %12 = math.log %11 : vector<2x8x1xf32>
    %13 = arith.addf %6, %12 : vector<2x8x1xf32>
    %14 = vector.broadcast %13 : vector<2x8x1xf32> to vector<2x8x2xf32>
    %15 = arith.subf %0, %14 : vector<2x8x2xf32>
    %16 = vector.extract_strided_slice %15 {offsets = [0, 0, 1], sizes = [2, 8, 1], strides = [1, 1, 1]} : vector<2x8x2xf32> to vector<2x8x1xf32>
    %17 = vector.extract_strided_slice %15 {offsets = [0, 0, 0], sizes = [2, 8, 1], strides = [1, 1, 1]} : vector<2x8x2xf32> to vector<2x8x1xf32>
    %18 = arith.select %4, %16, %17 : vector<2x8x1xi1>, vector<2x8x1xf32>
    %cst_7 = arith.constant 0.000000e+00 : f32
    %19 = vector.broadcast %cst_7 : f32 to vector<2x8x1xf32>
    %20 = arith.subf %19, %18 : vector<2x8x1xf32>
    %cst_8 = arith.constant 1.000000e-01 : f32
    %cst_9 = arith.constant 1.000000e+00 : f32
    %21 = vector.broadcast %cst_8 : f32 to vector<2x8x1xf32>
    %22 = vector.broadcast %cst_9 : f32 to vector<2x8x1xf32>
    %23 = arith.select %4, %21, %22 : vector<2x8x1xi1>, vector<2x8x1xf32>
    %24 = arith.mulf %20, %23 : vector<2x8x1xf32>
    %25 = vector.shape_cast %24 : vector<2x8x1xf32> to vector<1x2x8x1xf32>
    %cst_10 = arith.constant dense<0.000000e+00> : vector<1xf32>
    %26 = vector.multi_reduction <add>, %25, %cst_10 [1, 2, 3] : vector<1x2x8x1xf32> to vector<1xf32>
    %27 = vector.shape_cast %26 : vector<1xf32> to vector<1x1x1x1xf32>
    %28 = vector.extract %27[0, 0, 0, 0] : f32 from vector<1x1x1x1xf32>
    %29 = vector.shape_cast %23 : vector<2x8x1xf32> to vector<1x2x8x1xf32>
    %cst_11 = arith.constant dense<0.000000e+00> : vector<1xf32>
    %30 = vector.multi_reduction <add>, %29, %cst_11 [1, 2, 3] : vector<1x2x8x1xf32> to vector<1xf32>
    %31 = vector.shape_cast %30 : vector<1xf32> to vector<1x1x1x1xf32>
    %32 = vector.extract %31[0, 0, 0, 0] : f32 from vector<1x1x1x1xf32>
    %33 = arith.divf %28, %32 : f32
    %34 = vector.extract_strided_slice %0 {offsets = [0, 0, 1], sizes = [2, 8, 1], strides = [1, 1, 1]} : vector<2x8x2xf32> to vector<2x8x1xf32>
    %35 = vector.extract_strided_slice %0 {offsets = [0, 0, 0], sizes = [2, 8, 1], strides = [1, 1, 1]} : vector<2x8x2xf32> to vector<2x8x1xf32>
    %36 = arith.cmpf oge, %35, %34 : vector<2x8x1xf32>
    %37 = arith.extui %36 : vector<2x8x1xi1> to vector<2x8x1xi32>
    %38 = arith.sitofp %37 : vector<2x8x1xi32> to vector<2x8x1xf32>
    %39 = arith.extui %4 : vector<2x8x1xi1> to vector<2x8x1xi32>
    %40 = arith.sitofp %39 : vector<2x8x1xi32> to vector<2x8x1xf32>
    %cst_12 = arith.constant 1.000000e+00 : f32
    %41 = vector.broadcast %cst_12 : f32 to vector<2x8x1xf32>
    %42 = arith.subf %41, %40 : vector<2x8x1xf32>
    %cst_13 = arith.constant dense<0.000000e+00> : vector<2x1xf32>
    %43 = vector.multi_reduction <add>, %38, %cst_13 [1] : vector<2x8x1xf32> to vector<2x1xf32>
    %44 = vector.shape_cast %43 : vector<2x1xf32> to vector<2x1x1xf32>
    %cst_14 = arith.constant dense<0.000000e+00> : vector<2x1xf32>
    %45 = vector.multi_reduction <add>, %42, %cst_14 [1] : vector<2x8x1xf32> to vector<2x1xf32>
    %46 = vector.shape_cast %45 : vector<2x1xf32> to vector<2x1x1xf32>
    %47 = arith.subf %44, %46 : vector<2x1x1xf32>
    %48 = math.absf %47 : vector<2x1x1xf32>
    %49 = vector.shape_cast %48 : vector<2x1x1xf32> to vector<1x2x1x1xf32>
    %cst_15 = arith.constant dense<0.000000e+00> : vector<1xf32>
    %50 = vector.multi_reduction <add>, %49, %cst_15 [1, 2, 3] : vector<1x2x1x1xf32> to vector<1xf32>
    %51 = vector.shape_cast %50 : vector<1xf32> to vector<1x1x1x1xf32>
    %52 = vector.extract %51[0, 0, 0, 0] : f32 from vector<1x1x1x1xf32>
    %cst_16 = arith.constant 2.000000e+00 : f32
    %53 = arith.divf %52, %cst_16 : f32
    %c0_17 = arith.constant 0 : index
    %c0_18 = arith.constant 0 : index
    %c0_19 = arith.constant 0 : index
    %54 = vector.load %arg3[%c0_17, %c0_18, %c0_19] : memref<2x8x128xf32, #tpu.memory_space<vmem>>, vector<1x8x128xf32>
    %55 = vector.shape_cast %54 : vector<1x8x128xf32> to vector<8x128xf32>
    %c4_i32 = arith.constant 4 : i32
    %56 = tpu.dynamic_rotate %55 by %c4_i32 dim 0 : vector<8x128xf32>, i32 -> vector<8x128xf32>
    %57 = arith.subf %55, %56 : vector<8x128xf32>
    %58 = math.absf %57 : vector<8x128xf32>
    %59 = vector.shape_cast %58 : vector<8x128xf32> to vector<1x8x128xf32>
    %cst_20 = arith.constant dense<0.000000e+00> : vector<1xf32>
    %60 = vector.multi_reduction <add>, %59, %cst_20 [1, 2] : vector<1x8x128xf32> to vector<1xf32>
    %61 = vector.shape_cast %60 : vector<1xf32> to vector<1x1x1xf32>
    %62 = vector.extract %61[0, 0, 0] : f32 from vector<1x1x1xf32>
    %cst_21 = arith.constant 5.000000e-01 : f32
    %63 = arith.mulf %cst_21, %62 : f32
    %64 = vector.shape_cast %42 : vector<2x8x1xf32> to vector<1x2x8x1xf32>
    %cst_22 = arith.constant dense<0.000000e+00> : vector<1xf32>
    %65 = vector.multi_reduction <add>, %64, %cst_22 [1, 2, 3] : vector<1x2x8x1xf32> to vector<1xf32>
    %66 = vector.shape_cast %65 : vector<1xf32> to vector<1x1x1x1xf32>
    %67 = vector.extract %66[0, 0, 0, 0] : f32 from vector<1x1x1x1xf32>
    %cst_23 = arith.constant 1.000000e+00 : f32
    %68 = arith.maximumf %67, %cst_23 : f32
    %c0_24 = arith.constant 0 : index
    %c0_25 = arith.constant 0 : index
    %69 = memref.load %arg4[%c0_24, %c0_25] : memref<2x3xf32, #tpu.memory_space<smem>>
    memref.store %33, %arg4[%c0_24, %c0_25] : memref<2x3xf32, #tpu.memory_space<smem>>
    %c0_26 = arith.constant 0 : index
    %c1 = arith.constant 1 : index
    %70 = memref.load %arg4[%c0_26, %c1] : memref<2x3xf32, #tpu.memory_space<smem>>
    memref.store %53, %arg4[%c0_26, %c1] : memref<2x3xf32, #tpu.memory_space<smem>>
    %71 = arith.divf %63, %68 : f32
    %c0_27 = arith.constant 0 : index
    %c2 = arith.constant 2 : index
    %72 = memref.load %arg4[%c0_27, %c2] : memref<2x3xf32, #tpu.memory_space<smem>>
    memref.store %71, %arg4[%c0_27, %c2] : memref<2x3xf32, #tpu.memory_space<smem>>
    %c0_28 = arith.constant 0 : index
    %c0_29 = arith.constant 0 : index
    %c0_30 = arith.constant 0 : index
    %73 = vector.load %arg1[%c0_28, %c0_29, %c0_30] : memref<2x8x2xf32, #tpu.memory_space<vmem>>, vector<2x8x2xf32>
    %c1_31 = arith.constant 1 : index
    %c0_32 = arith.constant 0 : index
    %c0_33 = arith.constant 0 : index
    %c0_34 = arith.constant 0 : index
    %74 = vector.load %arg2[%c1_31, %c0_32, %c0_33, %c0_34] : memref<2x2x8x1xi32, #tpu.memory_space<vmem>>, vector<1x2x8x1xi32>
    %75 = vector.shape_cast %74 : vector<1x2x8x1xi32> to vector<2x8x1xi32>
    %c1_i32_35 = arith.constant 1 : i32
    %76 = vector.broadcast %c1_i32_35 : i32 to vector<2x8x1xi32>
    %77 = arith.cmpi eq, %75, %76 : vector<2x8x1xi32>
    %cst_36 = arith.constant dense<0xFF800000> : vector<2x8xf32>
    %78 = vector.multi_reduction <maximumf>, %73, %cst_36 [2] : vector<2x8x2xf32> to vector<2x8xf32>
    %79 = vector.shape_cast %78 : vector<2x8xf32> to vector<2x8x1xf32>
    %80 = vector.broadcast %79 : vector<2x8x1xf32> to vector<2x8x2xf32>
    %81 = arith.subf %73, %80 : vector<2x8x2xf32>
    %82 = math.exp %81 : vector<2x8x2xf32>
    %cst_37 = arith.constant dense<0.000000e+00> : vector<2x8xf32>
    %83 = vector.multi_reduction <add>, %82, %cst_37 [2] : vector<2x8x2xf32> to vector<2x8xf32>
    %84 = vector.shape_cast %83 : vector<2x8xf32> to vector<2x8x1xf32>
    %85 = math.log %84 : vector<2x8x1xf32>
    %86 = arith.addf %79, %85 : vector<2x8x1xf32>
    %87 = vector.broadcast %86 : vector<2x8x1xf32> to vector<2x8x2xf32>
    %88 = arith.subf %73, %87 : vector<2x8x2xf32>
    %89 = vector.extract_strided_slice %88 {offsets = [0, 0, 1], sizes = [2, 8, 1], strides = [1, 1, 1]} : vector<2x8x2xf32> to vector<2x8x1xf32>
    %90 = vector.extract_strided_slice %88 {offsets = [0, 0, 0], sizes = [2, 8, 1], strides = [1, 1, 1]} : vector<2x8x2xf32> to vector<2x8x1xf32>
    %91 = arith.select %77, %89, %90 : vector<2x8x1xi1>, vector<2x8x1xf32>
    %cst_38 = arith.constant 0.000000e+00 : f32
    %92 = vector.broadcast %cst_38 : f32 to vector<2x8x1xf32>
    %93 = arith.subf %92, %91 : vector<2x8x1xf32>
    %cst_39 = arith.constant 1.000000e-01 : f32
    %cst_40 = arith.constant 1.000000e+00 : f32
    %94 = vector.broadcast %cst_39 : f32 to vector<2x8x1xf32>
    %95 = vector.broadcast %cst_40 : f32 to vector<2x8x1xf32>
    %96 = arith.select %77, %94, %95 : vector<2x8x1xi1>, vector<2x8x1xf32>
    %97 = arith.mulf %93, %96 : vector<2x8x1xf32>
    %98 = vector.shape_cast %97 : vector<2x8x1xf32> to vector<1x2x8x1xf32>
    %cst_41 = arith.constant dense<0.000000e+00> : vector<1xf32>
    %99 = vector.multi_reduction <add>, %98, %cst_41 [1, 2, 3] : vector<1x2x8x1xf32> to vector<1xf32>
    %100 = vector.shape_cast %99 : vector<1xf32> to vector<1x1x1x1xf32>
    %101 = vector.extract %100[0, 0, 0, 0] : f32 from vector<1x1x1x1xf32>
    %102 = vector.shape_cast %96 : vector<2x8x1xf32> to vector<1x2x8x1xf32>
    %cst_42 = arith.constant dense<0.000000e+00> : vector<1xf32>
    %103 = vector.multi_reduction <add>, %102, %cst_42 [1, 2, 3] : vector<1x2x8x1xf32> to vector<1xf32>
    %104 = vector.shape_cast %103 : vector<1xf32> to vector<1x1x1x1xf32>
    %105 = vector.extract %104[0, 0, 0, 0] : f32 from vector<1x1x1x1xf32>
    %106 = arith.divf %101, %105 : f32
    %107 = vector.extract_strided_slice %73 {offsets = [0, 0, 1], sizes = [2, 8, 1], strides = [1, 1, 1]} : vector<2x8x2xf32> to vector<2x8x1xf32>
    %108 = vector.extract_strided_slice %73 {offsets = [0, 0, 0], sizes = [2, 8, 1], strides = [1, 1, 1]} : vector<2x8x2xf32> to vector<2x8x1xf32>
    %109 = arith.cmpf oge, %108, %107 : vector<2x8x1xf32>
    %110 = arith.extui %109 : vector<2x8x1xi1> to vector<2x8x1xi32>
    %111 = arith.sitofp %110 : vector<2x8x1xi32> to vector<2x8x1xf32>
    %112 = arith.extui %77 : vector<2x8x1xi1> to vector<2x8x1xi32>
    %113 = arith.sitofp %112 : vector<2x8x1xi32> to vector<2x8x1xf32>
    %cst_43 = arith.constant 1.000000e+00 : f32
    %114 = vector.broadcast %cst_43 : f32 to vector<2x8x1xf32>
    %115 = arith.subf %114, %113 : vector<2x8x1xf32>
    %cst_44 = arith.constant dense<0.000000e+00> : vector<2x1xf32>
    %116 = vector.multi_reduction <add>, %111, %cst_44 [1] : vector<2x8x1xf32> to vector<2x1xf32>
    %117 = vector.shape_cast %116 : vector<2x1xf32> to vector<2x1x1xf32>
    %cst_45 = arith.constant dense<0.000000e+00> : vector<2x1xf32>
    %118 = vector.multi_reduction <add>, %115, %cst_45 [1] : vector<2x8x1xf32> to vector<2x1xf32>
    %119 = vector.shape_cast %118 : vector<2x1xf32> to vector<2x1x1xf32>
    %120 = arith.subf %117, %119 : vector<2x1x1xf32>
    %121 = math.absf %120 : vector<2x1x1xf32>
    %122 = vector.shape_cast %121 : vector<2x1x1xf32> to vector<1x2x1x1xf32>
    %cst_46 = arith.constant dense<0.000000e+00> : vector<1xf32>
    %123 = vector.multi_reduction <add>, %122, %cst_46 [1, 2, 3] : vector<1x2x1x1xf32> to vector<1xf32>
    %124 = vector.shape_cast %123 : vector<1xf32> to vector<1x1x1x1xf32>
    %125 = vector.extract %124[0, 0, 0, 0] : f32 from vector<1x1x1x1xf32>
    %cst_47 = arith.constant 2.000000e+00 : f32
    %126 = arith.divf %125, %cst_47 : f32
    %c1_48 = arith.constant 1 : index
    %c0_49 = arith.constant 0 : index
    %c0_50 = arith.constant 0 : index
    %127 = vector.load %arg3[%c1_48, %c0_49, %c0_50] : memref<2x8x128xf32, #tpu.memory_space<vmem>>, vector<1x8x128xf32>
    %128 = vector.shape_cast %127 : vector<1x8x128xf32> to vector<8x128xf32>
    %c4_i32_51 = arith.constant 4 : i32
    %129 = tpu.dynamic_rotate %128 by %c4_i32_51 dim 0 : vector<8x128xf32>, i32 -> vector<8x128xf32>
    %130 = arith.subf %128, %129 : vector<8x128xf32>
    %131 = math.absf %130 : vector<8x128xf32>
    %132 = vector.shape_cast %131 : vector<8x128xf32> to vector<1x8x128xf32>
    %cst_52 = arith.constant dense<0.000000e+00> : vector<1xf32>
    %133 = vector.multi_reduction <add>, %132, %cst_52 [1, 2] : vector<1x8x128xf32> to vector<1xf32>
    %134 = vector.shape_cast %133 : vector<1xf32> to vector<1x1x1xf32>
    %135 = vector.extract %134[0, 0, 0] : f32 from vector<1x1x1xf32>
    %cst_53 = arith.constant 5.000000e-01 : f32
    %136 = arith.mulf %cst_53, %135 : f32
    %137 = vector.shape_cast %115 : vector<2x8x1xf32> to vector<1x2x8x1xf32>
    %cst_54 = arith.constant dense<0.000000e+00> : vector<1xf32>
    %138 = vector.multi_reduction <add>, %137, %cst_54 [1, 2, 3] : vector<1x2x8x1xf32> to vector<1xf32>
    %139 = vector.shape_cast %138 : vector<1xf32> to vector<1x1x1x1xf32>
    %140 = vector.extract %139[0, 0, 0, 0] : f32 from vector<1x1x1x1xf32>
    %cst_55 = arith.constant 1.000000e+00 : f32
    %141 = arith.maximumf %140, %cst_55 : f32
    %c1_56 = arith.constant 1 : index
    %c0_57 = arith.constant 0 : index
    %142 = memref.load %arg4[%c1_56, %c0_57] : memref<2x3xf32, #tpu.memory_space<smem>>
    memref.store %106, %arg4[%c1_56, %c0_57] : memref<2x3xf32, #tpu.memory_space<smem>>
    %c1_58 = arith.constant 1 : index
    %c1_59 = arith.constant 1 : index
    %143 = memref.load %arg4[%c1_58, %c1_59] : memref<2x3xf32, #tpu.memory_space<smem>>
    memref.store %126, %arg4[%c1_58, %c1_59] : memref<2x3xf32, #tpu.memory_space<smem>>
    %144 = arith.divf %136, %141 : f32
    %c1_60 = arith.constant 1 : index
    %c2_61 = arith.constant 2 : index
    %145 = memref.load %arg4[%c1_60, %c2_61] : memref<2x3xf32, #tpu.memory_space<smem>>
    memref.store %144, %arg4[%c1_60, %c2_61] : memref<2x3xf32, #tpu.memory_space<smem>>
    return
  }
}

</mosaic_0001>

<llo_original>
// kernel: _fused_losses.1
$region0: #{_fused_losses.1}
  #allocation0 [shape = 'u32[]', space=smem, size = 0x4, offset = 0x4, fixed_abs, tag = 'smem constant byte address 0x4 - core index']
  #allocation1 [shape = 'u32[144,128]{1,0:T(1,128)}', space=vmem, size = 0x12000, scoped, tag = 'internal scratch']
  %s0 = inlined_call_operand.vmem [shape: f32[2,8,2], index: 0, kind: input, shape index: {}]
  %s1 = inlined_call_operand.vmem [shape: f32[2,8,2], index: 1, kind: input, shape index: {}]
  %s2 = inlined_call_operand.vmem [shape: s32[2,2,8,1], index: 2, kind: input, shape index: {}]
  %s3 = inlined_call_operand.vmem [shape: f32[2,8,128], index: 3, kind: input, shape index: {}]
  %s4 = inlined_call_operand.vmem [shape: f32[2,3], index: 4, kind: output, shape index: {}]
  %s5 = sld [smem:[#allocation0]]
  $region26: #{_fused_losses.1} parent=0
    _
  %s7 = ssub.s32 1, %s5
  %s8 = scalar_select 0, %s7, %s5
  $region1: #{_fused_losses.1} parent=0
    #allocation2 [shape = 'u8[1024]{0}', space=smem, size = 0x400, scoped, tag = 'output window, operand 0, single buffered']
    #allocation3 [shape = 's32[1]{0}', space=sflag, size = 0x4, scoped, tag = 'scoped memory for _fused_losses.1']
    %9 = vsyncpa [#allocation3], 0
    // Predicated region
    $region2: #{_fused_losses.1} parent=1 // pred_check
      _
    $region3: #{_fused_losses.1} parent=1 // pred_check_branch
      %11 = sbr.rel (0) target = $region5
    $region4: #{_fused_losses.1} parent=1 // pred_region
      _
    $region5: #{_fused_losses.1} parent=1 // pred_fallthru
      _
    // Predicated region
    $region6: #{_fused_losses.1} parent=1 // pred_check
      _
    $region7: #{_fused_losses.1} parent=1 // pred_check_branch
      %13 = sbr.rel (0) target = $region9
    $region8: #{_fused_losses.1} parent=1 // pred_region
      _
    $region9: #{_fused_losses.1} parent=1 // pred_fallthru
      _
    // Predicated region
    $region10: #{_fused_losses.1} parent=1 // pred_check
      _
    $region11: #{_fused_losses.1} parent=1 // pred_check_branch
      %15 = sbr.rel (0) target = $region13
    $region12: #{_fused_losses.1} parent=1 // pred_region
      _
    $region13: #{_fused_losses.1} parent=1 // pred_fallthru
      _
    // Predicated region
    $region14: #{_fused_losses.1} parent=1 // pred_check
      _
    $region15: #{_fused_losses.1} parent=1 // pred_check_branch
      %17 = sbr.rel (0) target = $region17
    $region16: #{_fused_losses.1} parent=1 // pred_region
      _
    $region17: #{_fused_losses.1} parent=1 // pred_fallthru
      _
    %v18 = vld [vmem:[%s0] sm:$0xff]
    %v19 = vld [vmem:[%s0 + $0x8] sm:$0xff]
    %v20 = vld [vmem:[%s2] sm:$0xff]
    %v21 = vld [vmem:[%s2 + $0x8] sm:$0xff]
    %vm22 = vcmp.eq.s32.totalorder %v20, 1
    %vm23 = vcmp.eq.s32.totalorder %v21, 1
    %vm24 = vcmask 15360
    %v25 = vsel %vm24, %v18, -inf
    %26 = vmax.xlane.f32.xlu0 %v25
    %v27 = vpop.xlane.xlu0 %26
    %v28 = vsel %vm24, %v19, -inf
    %29 = vmax.xlane.f32.xlu0 %v28
    %v30 = vpop.xlane.xlu0 %29
    %v31 = vsub.f32 %v18, %v27
    %v32 = vsub.f32 %v19, %v30
    %v33 = vmul.f32 %v31, 1.442695
    %v34 = vpow.pop %v33
    %v35 = vmul.f32 %v32, 1.442695
    %v36 = vpow.pop %v35
    %v37 = vsel %vm24, %v34, 0.0
    %38 = vadd.xlane.f32.xlu0 %v37
    %v39 = vpop.xlane.xlu0 %38
    %v40 = vsel %vm24, %v36, 0.0
    %41 = vadd.xlane.f32.xlu0 %v40
    %v42 = vpop.xlane.xlu0 %41
    %v43 = vlog2.pop %v39
    %v44 = vmul.f32 %v43, 0.6931472
    %v45 = vlog2.pop %v42
    %v46 = vmul.f32 %v45, 0.6931472
    %v47 = vadd.f32 %v27, %v44
    %v48 = vadd.f32 %v30, %v46
    %v49 = vsub.f32 %v18, %v47
    %v50 = vsub.f32 %v19, %v48
    %53 = vrot.lane.b32.xlu0 %v49, 127
    %v54 = vpop.permute.xlu0 %53
    %55 = vrot.lane.b32.xlu0 %v50, 127
    %v56 = vpop.permute.xlu0 %55
    %v59 = vsel %vm22, %v54, %v49
    %v60 = vsel %vm23, %v56, %v50
    %v61 = vsub.f32 0.0, %v59
    %v62 = vsub.f32 0.0, %v60
    %v63 = vsel %vm22, 0.1, 1.0
    %v64 = vsel %vm23, 0.1, 1.0
    %v65 = vmul.f32 %v61, %v63
    %v66 = vmul.f32 %v62, %v64
    %vm67 = vcmask 7168
    %v68 = vsel %vm67, %v65, 0.0
    %v69 = vsel %vm67, %v66, 0.0
    %v70 = vadd.f32 %v68, %v69
    %71 = vadd.xlane.f32.xlu0 %v70
    %v72 = vpop.xlane.xlu0 %71
    %v73 = vrot.slane %v72, 4
    %v74 = vadd.f32 %v72, %v73
    %v75 = vrot.slane %v74, 2
    %v76 = vadd.f32 %v74, %v75
    %v77 = vrot.slane %v76, 1
    %v78 = vadd.f32 %v76, %v77
    %s79 = vtos %v78
    %v80 = vsel %vm67, %v63, 0.0
    %v81 = vsel %vm67, %v64, 0.0
    %v82 = vadd.f32 %v80, %v81
    %83 = vadd.xlane.f32.xlu0 %v82
    %v84 = vpop.xlane.xlu0 %83
    %v85 = vrot.slane %v84, 4
    %v86 = vadd.f32 %v84, %v85
    %v87 = vrot.slane %v86, 2
    %v88 = vadd.f32 %v86, %v87
    %v89 = vrot.slane %v88, 1
    %v90 = vadd.f32 %v88, %v89
    %s91 = vtos %v90
    %v92 = vstv %s91
    %v93 = vrcp.pop %v92
    %s94 = vtos %v93
    %s95 = smul.f32 %s79, %s94
    %98 = vrot.lane.b32.xlu0 %v18, 127
    %v99 = vpop.permute.xlu0 %98
    %100 = vrot.lane.b32.xlu0 %v19, 127
    %v101 = vpop.permute.xlu0 %100
    %vm104 = vcmp.ge.f32.partialorder %v18, %v99
    %vm105 = vcmp.ge.f32.partialorder %v19, %v101
    %v106 = vsel %vm104, 1, 0
    %v107 = vsel %vm105, 1, 0
    %v108 = vcvt.s32.f32 %v106
    %v109 = vcvt.s32.f32 %v107
    %v110 = vsel %vm22, 1, 0
    %v111 = vsel %vm23, 1, 0
    %v112 = vcvt.s32.f32 %v110
    %v113 = vcvt.s32.f32 %v111
    %v114 = vsub.f32 1.0, %v112
    %v115 = vsub.f32 1.0, %v113
    %v116 = vsel %vm67, %v108, 0.0
    %v117 = vrot.slane %v116, 4
    %v118 = vadd.f32 %v116, %v117
    %v119 = vrot.slane %v118, 2
    %v120 = vadd.f32 %v118, %v119
    %v121 = vrot.slane %v120, 1
    %v122 = vadd.f32 %v120, %v121
    %v123 = vsel %vm67, %v109, 0.0
    %v124 = vrot.slane %v123, 4
    %v125 = vadd.f32 %v123, %v124
    %v126 = vrot.slane %v125, 2
    %v127 = vadd.f32 %v125, %v126
    %v128 = vrot.slane %v127, 1
    %v129 = vadd.f32 %v127, %v128
    %v130 = vsel %vm67, %v114, 0.0
    %v131 = vrot.slane %v130, 4
    %v132 = vadd.f32 %v130, %v131
    %v133 = vrot.slane %v132, 2
    %v134 = vadd.f32 %v132, %v133
    %v135 = vrot.slane %v134, 1
    %v136 = vadd.f32 %v134, %v135
    %v137 = vsel %vm67, %v115, 0.0
    %v138 = vrot.slane %v137, 4
    %v139 = vadd.f32 %v137, %v138
    %v140 = vrot.slane %v139, 2
    %v141 = vadd.f32 %v139, %v140
    %v142 = vrot.slane %v141, 1
    %v143 = vadd.f32 %v141, %v142
    %v144 = vsub.f32 %v122, %v136
    %v145 = vsub.f32 %v129, %v143
    %v146 = vand.u32 2147483647, %v144
    %v147 = vand.u32 2147483647, %v145
    %vm148 = vcmask 0
    %v149 = vsel %vm148, %v146, 0.0
    %v150 = vsel %vm148, %v147, 0.0
    %v151 = vadd.f32 %v149, %v150
    %152 = vadd.xlane.f32.xlu0 %v151
    %v153 = vpop.xlane.xlu0 %152
    %v154 = vrot.slane %v153, 4
    %v155 = vadd.f32 %v153, %v154
    %v156 = vrot.slane %v155, 2
    %v157 = vadd.f32 %v155, %v156
    %v158 = vrot.slane %v157, 1
    %v159 = vadd.f32 %v157, %v158
    %s160 = vtos %v159
    %v161 = vrcp.pop 2.0
    %s162 = vtos %v161
    %s163 = smul.f32 %s160, %s162
    %v164 = vld [vmem:[%s3] sm:$0xff]
    %v165 = vrot.slane %v164, 4
    %v166 = vsub.f32 %v164, %v165
    %v167 = vand.u32 2147483647, %v166
    %168 = vadd.xlane.f32.xlu0 %v167
    %v169 = vpop.xlane.xlu0 %168
    %v170 = vrot.slane %v169, 4
    %v171 = vadd.f32 %v169, %v170
    %v172 = vrot.slane %v171, 2
    %v173 = vadd.f32 %v171, %v172
    %v174 = vrot.slane %v173, 1
    %v175 = vadd.f32 %v173, %v174
    %s176 = vtos %v175
    %s177 = smul.f32 %s176, 0.5
    %v178 = vadd.f32 %v130, %v137
    %179 = vadd.xlane.f32.xlu0 %v178
    %v180 = vpop.xlane.xlu0 %179
    %v181 = vrot.slane %v180, 4
    %v182 = vadd.f32 %v180, %v181
    %v183 = vrot.slane %v182, 2
    %v184 = vadd.f32 %v182, %v183
    %v185 = vrot.slane %v184, 1
    %v186 = vadd.f32 %v184, %v185
    %s187 = vtos %v186
    %s188 = smax.f32 %s187, 1.0
    %s189 = scalar_lea.smem [#allocation2], 0
    %190 = sst [smem:[%s189]] %s95
    %s191 = scalar_lea.smem [#allocation2], 1
    %192 = sst [smem:[%s191]] %s163
    %v193 = vstv %s188
    %v194 = vrcp.pop %v193
    %s195 = vtos %v194
    %s196 = smul.f32 %s177, %s195
    %s197 = scalar_lea.smem [#allocation2], 2
    %198 = sst [smem:[%s197]] %s196
    %v199 = vld [vmem:[%s1] sm:$0xff]
    %v200 = vld [vmem:[%s1 + $0x8] sm:$0xff]
    %s201 = scalar_lea.vmem %s2, 16
    %v202 = vld [vmem:[%s201] sm:$0xff]
    %v203 = vld [vmem:[%s201 + $0x8] sm:$0xff]
    %vm204 = vcmp.eq.s32.totalorder %v202, 1
    %vm205 = vcmp.eq.s32.totalorder %v203, 1
    %v206 = vsel %vm24, %v199, -inf
    %207 = vmax.xlane.f32.xlu0 %v206
    %v208 = vpop.xlane.xlu0 %207
    %v209 = vsel %vm24, %v200, -inf
    %210 = vmax.xlane.f32.xlu0 %v209
    %v211 = vpop.xlane.xlu0 %210
    %v212 = vsub.f32 %v199, %v208
    %v213 = vsub.f32 %v200, %v211
    %v214 = vmul.f32 %v212, 1.442695
    %v215 = vpow.pop %v214
    %v216 = vmul.f32 %v213, 1.442695
    %v217 = vpow.pop %v216
    %v218 = vsel %vm24, %v215, 0.0
    %219 = vadd.xlane.f32.xlu0 %v218
    %v220 = vpop.xlane.xlu0 %219
    %v221 = vsel %vm24, %v217, 0.0
    %222 = vadd.xlane.f32.xlu0 %v221
    %v223 = vpop.xlane.xlu0 %222
    %v224 = vlog2.pop %v220
    %v225 = vmul.f32 %v224, 0.6931472
    %v226 = vlog2.pop %v223
    %v227 = vmul.f32 %v226, 0.6931472
    %v228 = vadd.f32 %v208, %v225
    %v229 = vadd.f32 %v211, %v227
    %v230 = vsub.f32 %v199, %v228
    %v231 = vsub.f32 %v200, %v229
    %234 = vrot.lane.b32.xlu0 %v230, 127
    %v235 = vpop.permute.xlu0 %234
    %236 = vrot.lane.b32.xlu0 %v231, 127
    %v237 = vpop.permute.xlu0 %236
    %v240 = vsel %vm204, %v235, %v230
    %v241 = vsel %vm205, %v237, %v231
    %v242 = vsub.f32 0.0, %v240
    %v243 = vsub.f32 0.0, %v241
    %v244 = vsel %vm204, 0.1, 1.0
    %v245 = vsel %vm205, 0.1, 1.0
    %v246 = vmul.f32 %v242, %v244
    %v247 = vmul.f32 %v243, %v245
    %v248 = vsel %vm67, %v246, 0.0
    %v249 = vsel %vm67, %v247, 0.0
    %v250 = vadd.f32 %v248, %v249
    %251 = vadd.xlane.f32.xlu0 %v250
    %v252 = vpop.xlane.xlu0 %251
    %v253 = vrot.slane %v252, 4
    %v254 = vadd.f32 %v252, %v253
    %v255 = vrot.slane %v254, 2
    %v256 = vadd.f32 %v254, %v255
    %v257 = vrot.slane %v256, 1
    %v258 = vadd.f32 %v256, %v257
    %s259 = vtos %v258
    %v260 = vsel %vm67, %v244, 0.0
    %v261 = vsel %vm67, %v245, 0.0
    %v262 = vadd.f32 %v260, %v261
    %263 = vadd.xlane.f32.xlu0 %v262
    %v264 = vpop.xlane.xlu0 %263
    %v265 = vrot.slane %v264, 4
    %v266 = vadd.f32 %v264, %v265
    %v267 = vrot.slane %v266, 2
    %v268 = vadd.f32 %v266, %v267
    %v269 = vrot.slane %v268, 1
    %v270 = vadd.f32 %v268, %v269
    %s271 = vtos %v270
    %v272 = vstv %s271
    %v273 = vrcp.pop %v272
    %s274 = vtos %v273
    %s275 = smul.f32 %s259, %s274
    %278 = vrot.lane.b32.xlu0 %v199, 127
    %v279 = vpop.permute.xlu0 %278
    %280 = vrot.lane.b32.xlu0 %v200, 127
    %v281 = vpop.permute.xlu0 %280
    %vm284 = vcmp.ge.f32.partialorder %v199, %v279
    %vm285 = vcmp.ge.f32.partialorder %v200, %v281
    %v286 = vsel %vm284, 1, 0
    %v287 = vsel %vm285, 1, 0
    %v288 = vcvt.s32.f32 %v286
    %v289 = vcvt.s32.f32 %v287
    %v290 = vsel %vm204, 1, 0
    %v291 = vsel %vm205, 1, 0
    %v292 = vcvt.s32.f32 %v290
    %v293 = vcvt.s32.f32 %v291
    %v294 = vsub.f32 1.0, %v292
    %v295 = vsub.f32 1.0, %v293
    %v296 = vsel %vm67, %v288, 0.0
    %v297 = vrot.slane %v296, 4
    %v298 = vadd.f32 %v296, %v297
    %v299 = vrot.slane %v298, 2
    %v300 = vadd.f32 %v298, %v299
    %v301 = vrot.slane %v300, 1
    %v302 = vadd.f32 %v300, %v301
    %v303 = vsel %vm67, %v289, 0.0
    %v304 = vrot.slane %v303, 4
    %v305 = vadd.f32 %v303, %v304
    %v306 = vrot.slane %v305, 2
    %v307 = vadd.f32 %v305, %v306
    %v308 = vrot.slane %v307, 1
    %v309 = vadd.f32 %v307, %v308
    %v310 = vsel %vm67, %v294, 0.0
    %v311 = vrot.slane %v310, 4
    %v312 = vadd.f32 %v310, %v311
    %v313 = vrot.slane %v312, 2
    %v314 = vadd.f32 %v312, %v313
    %v315 = vrot.slane %v314, 1
    %v316 = vadd.f32 %v314, %v315
    %v317 = vsel %vm67, %v295, 0.0
    %v318 = vrot.slane %v317, 4
    %v319 = vadd.f32 %v317, %v318
    %v320 = vrot.slane %v319, 2
    %v321 = vadd.f32 %v319, %v320
    %v322 = vrot.slane %v321, 1
    %v323 = vadd.f32 %v321, %v322
    %v324 = vsub.f32 %v302, %v316
    %v325 = vsub.f32 %v309, %v323
    %v326 = vand.u32 2147483647, %v324
    %v327 = vand.u32 2147483647, %v325
    %v328 = vsel %vm148, %v326, 0.0
    %v329 = vsel %vm148, %v327, 0.0
    %v330 = vadd.f32 %v328, %v329
    %331 = vadd.xlane.f32.xlu0 %v330
    %v332 = vpop.xlane.xlu0 %331
    %v333 = vrot.slane %v332, 4
    %v334 = vadd.f32 %v332, %v333
    %v335 = vrot.slane %v334, 2
    %v336 = vadd.f32 %v334, %v335
    %v337 = vrot.slane %v336, 1
    %v338 = vadd.f32 %v336, %v337
    %s339 = vtos %v338
    %v340 = vrcp.pop 2.0
    %s341 = vtos %v340
    %s342 = smul.f32 %s339, %s341
    %s343 = scalar_lea.vmem %s3, 8
    %v344 = vld [vmem:[%s343] sm:$0xff]
    %v345 = vrot.slane %v344, 4
    %v346 = vsub.f32 %v344, %v345
    %v347 = vand.u32 2147483647, %v346
    %348 = vadd.xlane.f32.xlu0 %v347
    %v349 = vpop.xlane.xlu0 %348
    %v350 = vrot.slane %v349, 4
    %v351 = vadd.f32 %v349, %v350
    %v352 = vrot.slane %v351, 2
    %v353 = vadd.f32 %v351, %v352
    %v354 = vrot.slane %v353, 1
    %v355 = vadd.f32 %v353, %v354
    %s356 = vtos %v355
    %s357 = smul.f32 %s356, 0.5
    %v358 = vadd.f32 %v310, %v317
    %359 = vadd.xlane.f32.xlu0 %v358
    %v360 = vpop.xlane.xlu0 %359
    %v361 = vrot.slane %v360, 4
    %v362 = vadd.f32 %v360, %v361
    %v363 = vrot.slane %v362, 2
    %v364 = vadd.f32 %v362, %v363
    %v365 = vrot.slane %v364, 1
    %v366 = vadd.f32 %v364, %v365
    %s367 = vtos %v366
    %s368 = smax.f32 %s367, 1.0
    %s369 = scalar_lea.smem [#allocation2], 128
    %370 = sst [smem:[%s369]] %s275
    %s371 = scalar_lea.smem [#allocation2], 129
    %372 = sst [smem:[%s371]] %s342
    %v373 = vstv %s368
    %v374 = vrcp.pop %v373
    %s375 = vtos %v374
    %s376 = smul.f32 %s357, %s375
    %s377 = scalar_lea.smem [#allocation2], 130
    %378 = sst [smem:[%s377]] %s376
    // Predicated region
    $region18: #{_fused_losses.1} parent=1 // pred_check
      _
    $region19: #{_fused_losses.1} parent=1 // pred_check_branch
      %380 = sbr.rel (0) target = $region21
    $region20: #{_fused_losses.1} parent=1 // pred_region
      %s382 = ssub.s32 32, 32
      %383 = vsyncadd [#allocation3], %s382
      %s385 = sshll.u32 %s4, 4
      %s386 = int_to_ptr.vmem [resolvable:$true] %s385
      %388 = dma.smem_to_vmem [#allocation2], 32, %s386, [#allocation3]
    $region21: #{_fused_losses.1} parent=1 // pred_fallthru
      _
    // Predicated region
    $region22: #{_fused_losses.1} parent=1 // pred_check
      _
    $region23: #{_fused_losses.1} parent=1 // pred_check_branch
      %390 = sbr.rel (0) target = $region25
    $region24: #{_fused_losses.1} parent=1 // pred_region
      %391 = dma.done [#allocation3], 32
    $region25: #{_fused_losses.1} parent=1 // pred_fallthru
      _
    %392 = sfence
    %393 = vsyncpa [#allocation3], 1

</llo_original>
